<compile_context>
chip_gen: v6e
topology: v6e:2x2x1
jax: 0.10.0
libtpu: 0.0.40
codegen_flags: <defaults>
</compile_context>

<pallas_src>
import math

import jax
import jax.numpy as jnp
from jax.experimental import pallas as pl
from jax.experimental.pallas import tpu as pltpu


# ---------------------------------------------------------------------------
# Kernels
# ---------------------------------------------------------------------------

def _geometric_bias_kron_kernel(kt_ref, x_ref, o_ref):
    """Small-dim path: one lane-dense MXU matmul per batch tile.

    kt_ref : VMEM (d2, d2) f32 -- (scale * kron(D, D))^T, constant tile (never re-DMA'd)
    x_ref  : VMEM (tb, d2)     -- row-major-flattened X rows
    o_ref  : VMEM (tb, d2)
    """
    x = x_ref[...].astype(jnp.float32)      # force f32 MXU inputs even for bf16 I/O
    o_ref[...] = jnp.dot(
        x, kt_ref[...], preferred_element_type=jnp.float32
    ).astype(o_ref.dtype)


def _geometric_bias_direct_kernel(scale_ref, d_ref, x_ref, o_ref, t_ref):
    """Large-dim path: scale * D @ X @ D^T on a tile of tb matrices, X pre-flattened.

    scale_ref : SMEM (1,) f32          -- learnable scalar
    d_ref     : VMEM (dim, dim) f32    -- SPD-corrected, spectrally-normalized D (symmetric)
    x_ref     : VMEM (tb*dim, dim)     -- tb stacked X matrices (batch rows merged)
    o_ref     : VMEM (tb*dim, dim)
    t_ref     : VMEM (tb*dim, dim) f32 -- scratch for the intermediate scale * X @ D^T
    """
    dim = d_ref.shape[0]
    tb = x_ref.shape[0] // dim
    d = d_ref[...]
    x = x_ref[...].astype(jnp.float32)      # force f32 MXU inputs even for bf16 I/O
    # Right multiply, merged over the whole batch tile (single full-M MXU matmul).
    # D is symmetric, so X @ D == X @ D^T; the scale is applied once here.
    t_ref[...] = jnp.dot(x, d, preferred_element_type=jnp.float32) * scale_ref[0]

    # Left multiply: one (dim, dim) matmul per batch matrix, reusing the single D
    # (no broadcast_to copies of D in VMEM).
    def body(b, carry):
        r0 = b * dim
        y = jnp.dot(d, t_ref[pl.ds(r0, dim), :], preferred_element_type=jnp.float32)
        o_ref[pl.ds(r0, dim), :] = y.astype(o_ref.dtype)
        return carry

    jax.lax.fori_loop(0, tb, body, 0, unroll=tb <= 8)


# ---------------------------------------------------------------------------
# Parameter preprocessing (X-independent glue, plain JAX)
# ---------------------------------------------------------------------------

def _power_iteration_sigma(D, iters):
    """Approximate largest eigenvalue of a symmetric PSD matrix (Rayleigh quotient)."""
    dim = D.shape[-1]
    v = jnp.full((dim,), 1.0 / jnp.sqrt(dim), dtype=jnp.float32)

    def body(_, v):
        w = D @ v
        return w / jnp.maximum(jnp.linalg.norm(w), 1e-30)

    v = jax.lax.fori_loop(0, iters, body, v)
    return v @ (D @ v)


def correct_and_normalize(D_param, epsilon=1e-4, eps=1e-6, method="eigh", power_iters=32):
    """Matches GeometricBiasBlock.correct_and_normalize for a 2-D parameter matrix.

    Always computed in float32 for conditioning, regardless of X dtype.
    method='eigh'  : exact spectral norm via eigvalsh (D is symmetric after correction).
    method='power' : approximate power iteration (faster for very large dim, but inexact
                     for tightly clustered spectra -> opt-in only).
    """
    # TODO(synk): the spectral norm (eigvalsh / SVD) has no Pallas equivalent; it is
    # X-independent parameter preprocessing and stays in plain JAX glue.
    D = D_param.astype(jnp.float32)
    dim = D.shape[-1]
    eye = jnp.eye(dim, dtype=jnp.float32)
    # SPD correction.
    D = D @ D.T
    D = (D + D.T) / 2
    D = D + epsilon * eye
    # Spectral normalization (largest singular value == max |eigenvalue|, D symmetric).
    if method == "power":
        sigma = _power_iteration_sigma(D, power_iters)
    else:
        sigma = jnp.max(jnp.abs(jnp.linalg.eigvalsh(D)))
    spectral_norm = jnp.maximum(sigma, eps)
    D = D / (spectral_norm + eps)
    D = (D + D.T) / 2
    return D


# ---------------------------------------------------------------------------
# Tiling / spec helpers
# ---------------------------------------------------------------------------

def _pick_batch_tile(B, bytes_per_item, sublanes_per_item, override,
                     target_bytes=4 << 20, min_steps=4):
    """Batch-tile size in items (flattened matrices for kron, matrices for direct).

    Targets ~target_bytes of X per grid step, keeps >= min_steps grid steps when the batch
    allows it (so a v7x megacore can split the 'parallel' axis across both TensorCores),
    and keeps the second-to-last block dim a multiple of 8 whenever the tile does not
    cover the whole batch (the (8, 128) BlockSpec rule).
    """
    if override is not None:
        tb = max(1, min(int(override), B))
    else:
        tb = max(1, target_bytes // max(1, bytes_per_item))
        if B > min_steps:
            tb = min(tb, max(1, B // min_steps))
        tb = min(tb, B)
    if tb < B:
        step = 8 // math.gcd(sublanes_per_item, 8)
        tb = max(step, (tb // step) * step)
        if tb >= B:
            tb = B
    return tb


def _maybe_single_buffered(block_shape, index_map, nbytes):
    """Constant-index operands never re-DMA, but by default still get 2 pipeline buffers.

    Request a single buffer once the tile is large enough for the VMEM saving to matter;
    fall back silently if this JAX does not expose pipeline_mode on BlockSpec.
    """
    if nbytes >= (1 << 20):
        try:
            return pl.BlockSpec(block_shape, index_map, pipeline_mode=pl.Buffered(1))
        except (TypeError, AttributeError):
            pass
    return pl.BlockSpec(block_shape, index_map)


def _vmem_limit(est_bytes):
    """Raise the scoped-VMEM limit only when the working set needs it.

    The conservative default is 16 MiB on v5e / 32 MiB on v6e & v7x; cap well below v7x's
    64 MiB physical VMEM.
    """
    if est_bytes <= (16 << 20):
        return None
    return int(min(max(32 << 20, est_bytes * 5 // 4 + (1 << 20)), 48 << 20))


# ---------------------------------------------------------------------------
# Pallas wrappers
# ---------------------------------------------------------------------------

def _kron_path(X, D, scale, block_b):
    """dim <= cutoff: vec-trick; one lane-dense (tb, d2) x (d2, d2) matmul per step."""
    B, dim, _ = X.shape
    d2 = dim * dim
    # Row-major vec-trick: vec(D @ Xb @ D^T) = vec(Xb) @ kron(D, D)^T.
    # The learnable scale is folded into the X-independent constant factor (f32).
    K = jnp.asarray(scale, jnp.float32).reshape(()) * jnp.kron(D, D)
    KT = K.T                                   # symmetric for symmetric D, kept explicit
    Xf = X.reshape(B, d2)                      # free row-major metadata reshape

    itemsize = X.dtype.itemsize
    tb = _pick_batch_tile(B, d2 * itemsize, 1, block_b)
    grid = (pl.cdiv(B, tb),)                   # un-padded ragged batch: partial tail block

    kt_bytes = d2 * d2 * 4
    est = 2 * kt_bytes + 4 * tb * d2 * itemsize          # KT + double-buffered in/out tiles

    out = pl.pallas_call(
        _geometric_bias_kron_kernel,
        out_shape=jax.ShapeDtypeStruct((B, d2), X.dtype),
        grid_spec=pltpu.PrefetchScalarGridSpec(
            num_scalar_prefetch=0,
            grid=grid,
            in_specs=[
                _maybe_single_buffered((d2, d2), lambda b: (0, 0), kt_bytes),  # K^T (const)
                pl.BlockSpec((tb, d2), lambda b: (b, 0)),                      # X tile
            ],
            out_specs=pl.BlockSpec((tb, d2), lambda b: (b, 0)),
        ),
        compiler_params=pltpu.CompilerParams(
            dimension_semantics=("parallel",),           # batch axis -> both v7x TCs
            vmem_limit_bytes=_vmem_limit(est),
        ),
    )(KT, Xf)
    return out.reshape(B, dim, dim)


def _direct_path(X, D, scale, block_b):
    """dim > cutoff: scale * D @ X @ D^T on tiles of tb matrices per grid step."""
    B, dim, _ = X.shape
    scale_arr = jnp.asarray(scale, jnp.float32).reshape((1,))
    Xf = X.reshape(B * dim, dim)               # free metadata reshape (batch rows merged)

    itemsize = X.dtype.itemsize
    tb = _pick_batch_tile(B, dim * dim * itemsize, dim, block_b)
    rows = tb * dim
    grid = (pl.cdiv(B, tb),)                   # un-padded ragged batch: partial tail block

    d_bytes = dim * dim * 4
    est = (2 * d_bytes                         # D (single-buffered when large)
           + 4 * rows * dim * itemsize         # double-buffered X / out tiles
           + rows * dim * 4)                   # f32 scratch for the intermediate X @ D^T
    # TODO(synk): for dim >= ~1024 in f32 also tile the matrix dims themselves; a single
    # (dim, dim) tile plus double buffering stops fitting v7x's 64 MiB VMEM near dim~2000.

    out = pl.pallas_call(
        _geometric_bias_direct_kernel,
        out_shape=jax.ShapeDtypeStruct((B * dim, dim), X.dtype),
        grid_spec=pltpu.PrefetchScalarGridSpec(
            num_scalar_prefetch=0,
            grid=grid,
            in_specs=[
                pl.BlockSpec(memory_space=pltpu.MemorySpace.SMEM),              # scale
                _maybe_single_buffered((dim, dim), lambda b: (0, 0), d_bytes),  # D (const)
                pl.BlockSpec((rows, dim), lambda b: (b, 0)),                    # X rows tile
            ],
            out_specs=pl.BlockSpec((rows, dim), lambda b: (b, 0)),
            scratch_shapes=[pltpu.VMEM((rows, dim), jnp.float32)],
        ),
        compiler_params=pltpu.CompilerParams(
            dimension_semantics=("parallel",),
            vmem_limit_bytes=_vmem_limit(est),
        ),
    )(scale_arr, D, Xf)
    return out.reshape(B, dim, dim)


def geometric_bias_block(X, D_param, scale, epsilon=1e-4, block_b=None,
                         kron_dim_cutoff=32, spectral_method="eigh"):
    """Forward pass of GeometricBiasBlock (mode='learnable').

    X       : (B, dim, dim) or (dim, dim)
    D_param : (dim, dim)  raw learnable parameter
    scale   : (1,)        learnable scalar

    kron_dim_cutoff: dims <= cutoff use the Kronecker vec-trick path.  The default (32)
    is tuned for v6e/v7x; on v5e (f32 MXU rate far below peak) a lower cutoff (~16-24)
    avoids flipping the kron matmul into the compute-bound regime.
    """
    squeeze = X.ndim == 2
    if squeeze:
        X = X[None]
    dim = X.shape[-1]

    D = correct_and_normalize(D_param, epsilon=epsilon, method=spectral_method)

    if dim <= kron_dim_cutoff:
        out = _kron_path(X, D, scale, block_b)
    else:
        out = _direct_path(X, D, scale, block_b)

    return out[0] if squeeze else out


# ---------------------------------------------------------------------------
# Demo / correctness check
# ---------------------------------------------------------------------------

if __name__ == "__main__":
    key = jax.random.PRNGKey(0)
    k_x, k_d, k_x2, k_x3, k_d4, k_x4 = jax.random.split(key, 6)

    scale = jnp.ones((1,), dtype=jnp.float32)

    # --- small-dim (Kronecker) path: dim=16, tiny batch (single full block) ---
    B, dim = 2, 16
    D_param = jnp.eye(dim, dtype=jnp.float32) + 0.01 * jax.random.normal(
        k_d, (dim, dim), dtype=jnp.float32)
    X = jax.random.normal(k_x, (B, dim, dim), dtype=jnp.float32)
    out = jax.block_until_ready(geometric_bias_block(X, D_param, scale))
    D_ref = correct_and_normalize(D_param)
    ref = scale[0] * jnp.einsum("ip,bpq,jq->bij", D_ref, X, D_ref)
    assert out.shape == (B, dim, dim)
    assert jnp.allclose(out, ref, atol=1e-4, rtol=1e-4)

    # --- ragged batch + explicit small tile: multi-step parallel grid, partial tail ---
    B2 = 37
    X2 = jax.random.normal(k_x2, (B2, dim, dim), dtype=jnp.float32)
    out2 = jax.block_until_ready(geometric_bias_block(X2, D_param, scale, block_b=8))
    ref2 = scale[0] * jnp.einsum("ip,bpq,jq->bij", D_ref, X2, D_ref)
    assert out2.shape == (B2, dim, dim)
    assert jnp.allclose(out2, ref2, atol=1e-4, rtol=1e-4)

    # --- ragged batch with the default adaptive, megacore-aware tile pick ---
    B3 = 100
    X3 = jax.random.normal(k_x3, (B3, dim, dim), dtype=jnp.float32)
    out3 = jax.block_until_ready(geometric_bias_block(X3, D_param, scale))
    ref3 = scale[0] * jnp.einsum("ip,bpq,jq->bij", D_ref, X3, D_ref)
    assert out3.shape == (B3, dim, dim)
    assert jnp.allclose(out3, ref3, atol=1e-4, rtol=1e-4)

    # --- large-dim (direct) path: dim=40 > 32, tiled batch with partial tail block ---
    B4, dim4 = 5, 40
    D_param4 = jnp.eye(dim4, dtype=jnp.float32) + 0.01 * jax.random.normal(
        k_d4, (dim4, dim4), dtype=jnp.float32)
    X4 = jax.random.normal(k_x4, (B4, dim4, dim4), dtype=jnp.float32)
    out4 = jax.block_until_ready(geometric_bias_block(X4, D_param4, scale, block_b=2))
    D_ref4 = correct_and_normalize(D_param4)
    ref4 = scale[0] * jnp.einsum("ip,bpq,jq->bij", D_ref4, X4, D_ref4)
    assert out4.shape == (B4, dim4, dim4)
    assert jnp.allclose(out4, ref4, atol=1e-4, rtol=1e-4)

    print("KERNEL_OK")
</pallas_src>

<mosaic_0001>
module attributes {stable_mosaic.version = 11 : i64} {
  func.func @_geometric_bias_kron_kernel(%arg0: i32, %arg1: memref<256x256xf32, #tpu.memory_space<vmem>>, %arg2: memref<2x256xf32, #tpu.memory_space<vmem>>, %arg3: memref<2x256xf32, #tpu.memory_space<vmem>>) attributes {dimension_semantics = [#tpu.dimension_semantics<parallel>], iteration_bounds = array<i64: 1>, scalar_prefetch = 0 : i64, scratch_operands = 0 : i64, tpu.core_type = #tpu.core_type<tc>, window_params = [{pipeline_mode = #tpu.pipeline_mode<synchronous>, transform_indices = @transform_0, window_bounds = array<i64: 256, 256>}, {transform_indices = @transform_1, window_bounds = array<i64: 2, 256>}, {transform_indices = @transform_2, window_bounds = array<i64: 2, 256>}]} {
    %c0 = arith.constant 0 : index
    %c0_0 = arith.constant 0 : index
    %0 = vector.load %arg2[%c0, %c0_0] : memref<2x256xf32, #tpu.memory_space<vmem>>, vector<2x256xf32>
    %c0_1 = arith.constant 0 : index
    %c0_2 = arith.constant 0 : index
    %1 = vector.load %arg1[%c0_1, %c0_2] : memref<256x256xf32, #tpu.memory_space<vmem>>, vector<256x256xf32>
    %cst = arith.constant dense<0.000000e+00> : vector<2x256xf32>
    %2 = tpu.matmul %0, %1, %cst {dimension_numbers = #tpu.dot_dimension_numbers<[1], [0], [0], [1], [0, 0, 1, 1], [], []>} : vector<2x256xf32>, vector<256x256xf32>, vector<2x256xf32> -> vector<2x256xf32>
    %c0_3 = arith.constant 0 : index
    %c0_4 = arith.constant 0 : index
    %3 = vector.load %arg3[%c0_3, %c0_4] : memref<2x256xf32, #tpu.memory_space<vmem>>, vector<2x256xf32>
    tpu.vector_store %arg3[%c0_3, %c0_4], %2 {strides = array<i32>} : memref<2x256xf32, #tpu.memory_space<vmem>>, vector<2x256xf32>,
    return
  }
  func.func @transform_0(%arg0: i32) -> (i32, i32) {
    %c0_i32 = arith.constant 0 : i32
    %c0_i32_0 = arith.constant 0 : i32
    %c0_i32_1 = arith.constant 0 : i32
    return %c0_i32, %c0_i32_0 : i32, i32
  }
  func.func @transform_1(%arg0: i32) -> (i32, i32) {
    %c0_i32 = arith.constant 0 : i32
    %c0_i32_0 = arith.constant 0 : i32
    return %arg0, %c0_i32 : i32, i32
  }
  func.func @transform_2(%arg0: i32) -> (i32, i32) {
    %c0_i32 = arith.constant 0 : i32
    %c0_i32_0 = arith.constant 0 : i32
    return %arg0, %c0_i32 : i32, i32
  }
}

</mosaic_0001>

<llo_original>
// kernel: tpu_custom_call.1
$region0: #{tpu_custom_call.1}
  #allocation0 [shape = 'u32[]', space=smem, size = 0x4, offset = 0x4, fixed_abs, tag = 'smem constant byte address 0x4 - core index']
  #allocation1 [shape = 'u32[144,128]{1,0:T(1,128)}', space=vmem, size = 0x12000, scoped, tag = 'internal scratch']
  %s0 = inlined_call_operand.hbm [shape: f32[256,256], index: 0, kind: input, shape index: {}]
  %s1 = inlined_call_operand.hbm [shape: f32[2,256], index: 1, kind: input, shape index: {}]
  %s2 = inlined_call_operand.hbm [shape: f32[2,256], index: 2, kind: output, shape index: {}]
  %s3 = sld [smem:[#allocation0]]
  $region26: #{tpu_custom_call.1} parent=0
    _
  %s5 = ssub.s32 1, %s3
  %s6 = scalar_select 0, %s5, %s3
  $region1: #{tpu_custom_call.1} parent=0
    #allocation2 [shape = 'u8[262144]{0}', space=vmem, size = 0x40000, scoped, tag = 'input window, operand 0, single buffered']
    #allocation3 [shape = 's32[1]{0}', space=sflag, size = 0x4, scoped, tag = 'scoped memory for tpu_custom_call.1']
    #allocation4 [shape = 's32[1]{0}', space=sflag, size = 0x4, scoped, tag = 'scoped memory for tpu_custom_call.1']
    #allocation5 [shape = 'u8[2048]{0}', space=vmem, size = 0x800, scoped, tag = 'input window, operand 1, single buffered']
    #allocation6 [shape = 's32[1]{0}', space=sflag, size = 0x4, scoped, tag = 'scoped memory for tpu_custom_call.1']
    #allocation7 [shape = 'u8[2048]{0}', space=vmem, size = 0x800, scoped, tag = 'output window, operand 0, single buffered']
    %7 = vsyncpa [#allocation3], 0
    %8 = vsyncpa [#allocation6], 0
    %9 = vsyncpa [#allocation4], 0
    // Predicated region
    $region2: #{tpu_custom_call.1} parent=1 // pred_check
      _
    $region3: #{tpu_custom_call.1} parent=1 // pred_check_branch
      %11 = sbr.rel (0) target = $region5
    $region4: #{tpu_custom_call.1} parent=1 // pred_region
      %s13 = ssub.s32 8192, 8192
      %14 = vsyncadd [#allocation3], %s13
      %s15 = sshll.u32 [#allocation2], 4
      %s16 = int_to_ptr.vmem [resolvable:$true] %s15
      %21 = dma.hbm_to_vmem [thread:$0]  %s0, 8192, %s16, [#allocation3], 256, 256, 16
    $region5: #{tpu_custom_call.1} parent=1 // pred_fallthru
      _
    // Predicated region
    $region6: #{tpu_custom_call.1} parent=1 // pred_check
      _
    $region7: #{tpu_custom_call.1} parent=1 // pred_check_branch
      %23 = sbr.rel (0) target = $region9
    $region8: #{tpu_custom_call.1} parent=1 // pred_region
      %s25 = ssub.s32 64, 64
      %26 = vsyncadd [#allocation6], %s25
      %s28 = sshll.u32 [#allocation5], 4
      %s29 = int_to_ptr.vmem [resolvable:$true] %s28
      %31 = dma.hbm_to_vmem [thread:$0]  %s1, 64, %s29, [#allocation6]
    $region9: #{tpu_custom_call.1} parent=1 // pred_fallthru
      _
    // Predicated region
    $region10: #{tpu_custom_call.1} parent=1 // pred_check
      _
    $region11: #{tpu_custom_call.1} parent=1 // pred_check_branch
      %33 = sbr.rel (0) target = $region13
    $region12: #{tpu_custom_call.1} parent=1 // pred_region
      %34 = dma.done [#allocation3], 8192
    $region13: #{tpu_custom_call.1} parent=1 // pred_fallthru
      _
    // Predicated region
    $region14: #{tpu_custom_call.1} parent=1 // pred_check
      _
    $region15: #{tpu_custom_call.1} parent=1 // pred_check_branch
      %36 = sbr.rel (0) target = $region17
    $region16: #{tpu_custom_call.1} parent=1 // pred_region
      %37 = dma.done [#allocation6], 64
    $region17: #{tpu_custom_call.1} parent=1 // pred_fallthru
      _
    %v38 = vld [vmem:[#allocation5] sm:$0xf]
    %v39 = vld [vmem:[#allocation2] sm:$0xff]
    %v40 = vld [vmem:[#allocation2 + $0x8] sm:$0xff]
    %v41 = vld [vmem:[#allocation2 + $0x10] sm:$0xff]
    %v42 = vld [vmem:[#allocation2 + $0x18] sm:$0xff]
    %v43 = vld [vmem:[#allocation2 + $0x20] sm:$0xff]
    %v44 = vld [vmem:[#allocation2 + $0x28] sm:$0xff]
    %v45 = vld [vmem:[#allocation2 + $0x30] sm:$0xff]
    %v46 = vld [vmem:[#allocation2 + $0x38] sm:$0xff]
    %v47 = vld [vmem:[#allocation2 + $0x40] sm:$0xff]
    %v48 = vld [vmem:[#allocation2 + $0x48] sm:$0xff]
    %v49 = vld [vmem:[#allocation2 + $0x50] sm:$0xff]
    %v50 = vld [vmem:[#allocation2 + $0x58] sm:$0xff]
    %v51 = vld [vmem:[#allocation2 + $0x60] sm:$0xff]
    %v52 = vld [vmem:[#allocation2 + $0x68] sm:$0xff]
    %v53 = vld [vmem:[#allocation2 + $0x70] sm:$0xff]
    %v54 = vld [vmem:[#allocation2 + $0x78] sm:$0xff]
    %v55 = vld [vmem:[#allocation2 + $0x80] sm:$0xff]
    %v56 = vld [vmem:[#allocation2 + $0x88] sm:$0xff]
    %v57 = vld [vmem:[#allocation2 + $0x90] sm:$0xff]
    %v58 = vld [vmem:[#allocation2 + $0x98] sm:$0xff]
    %v59 = vld [vmem:[#allocation2 + $0xa0] sm:$0xff]
    %v60 = vld [vmem:[#allocation2 + $0xa8] sm:$0xff]
    %v61 = vld [vmem:[#allocation2 + $0xb0] sm:$0xff]
    %v62 = vld [vmem:[#allocation2 + $0xb8] sm:$0xff]
    %v63 = vld [vmem:[#allocation2 + $0xc0] sm:$0xff]
    %v64 = vld [vmem:[#allocation2 + $0xc8] sm:$0xff]
    %v65 = vld [vmem:[#allocation2 + $0xd0] sm:$0xff]
    %v66 = vld [vmem:[#allocation2 + $0xd8] sm:$0xff]
    %v67 = vld [vmem:[#allocation2 + $0xe0] sm:$0xff]
    %v68 = vld [vmem:[#allocation2 + $0xe8] sm:$0xff]
    %v69 = vld [vmem:[#allocation2 + $0xf0] sm:$0xff]
    %v70 = vld [vmem:[#allocation2 + $0xf8] sm:$0xff]
    %v71 = vld [vmem:[#allocation2 + $0x100] sm:$0xff]
    %v72 = vld [vmem:[#allocation2 + $0x108] sm:$0xff]
    %v73 = vld [vmem:[#allocation2 + $0x110] sm:$0xff]
    %v74 = vld [vmem:[#allocation2 + $0x118] sm:$0xff]
    %v75 = vld [vmem:[#allocation2 + $0x120] sm:$0xff]
    %v76 = vld [vmem:[#allocation2 + $0x128] sm:$0xff]
    %v77 = vld [vmem:[#allocation2 + $0x130] sm:$0xff]
    %v78 = vld [vmem:[#allocation2 + $0x138] sm:$0xff]
    %v79 = vld [vmem:[#allocation2 + $0x140] sm:$0xff]
    %v80 = vld [vmem:[#allocation2 + $0x148] sm:$0xff]
    %v81 = vld [vmem:[#allocation2 + $0x150] sm:$0xff]
    %v82 = vld [vmem:[#allocation2 + $0x158] sm:$0xff]
    %v83 = vld [vmem:[#allocation2 + $0x160] sm:$0xff]
    %v84 = vld [vmem:[#allocation2 + $0x168] sm:$0xff]
    %v85 = vld [vmem:[#allocation2 + $0x170] sm:$0xff]
    %v86 = vld [vmem:[#allocation2 + $0x178] sm:$0xff]
    %v87 = vld [vmem:[#allocation2 + $0x180] sm:$0xff]
    %v88 = vld [vmem:[#allocation2 + $0x188] sm:$0xff]
    %v89 = vld [vmem:[#allocation2 + $0x190] sm:$0xff]
    %v90 = vld [vmem:[#allocation2 + $0x198] sm:$0xff]
    %v91 = vld [vmem:[#allocation2 + $0x1a0] sm:$0xff]
    %v92 = vld [vmem:[#allocation2 + $0x1a8] sm:$0xff]
    %v93 = vld [vmem:[#allocation2 + $0x1b0] sm:$0xff]
    %v94 = vld [vmem:[#allocation2 + $0x1b8] sm:$0xff]
    %v95 = vld [vmem:[#allocation2 + $0x1c0] sm:$0xff]
    %v96 = vld [vmem:[#allocation2 + $0x1c8] sm:$0xff]
    %v97 = vld [vmem:[#allocation2 + $0x1d0] sm:$0xff]
    %v98 = vld [vmem:[#allocation2 + $0x1d8] sm:$0xff]
    %v99 = vld [vmem:[#allocation2 + $0x1e0] sm:$0xff]
    %v100 = vld [vmem:[#allocation2 + $0x1e8] sm:$0xff]
    %v101 = vld [vmem:[#allocation2 + $0x1f0] sm:$0xff]
    %v102 = vld [vmem:[#allocation2 + $0x1f8] sm:$0xff]
    %v105 = vunpack.c.l.s4 1983009808
    %v106 = vunpack.c.0.s8 %v105
    %v107 = vlaneseq
    %v108 = vshrl.u32 %v107, 7
    %v109 = vsub.s32 %v106, %v108
    %v110 = vrot.slane %v38, %v109
    %v111 = vcombine.high %v110, %v110
    %114 = vmatprep.subr.mxu0 %v70
    %115 = vmatpush1.msra.mxu0 %v69
    %116 = vmatprep.subr.mxu0 %v68
    %117 = vmatpush1.msra.mxu0 %v67
    %118 = vmatprep.subr.mxu0 %v66
    %119 = vmatpush1.msra.mxu0 %v65
    %120 = vmatprep.subr.mxu0 %v64
    %121 = vmatpush1.msra.mxu0 %v63
    %122 = vmatprep.subr.mxu0 %v62
    %123 = vmatpush1.msra.mxu0 %v61
    %124 = vmatprep.subr.mxu0 %v60
    %125 = vmatpush1.msra.mxu0 %v59
    %126 = vmatprep.subr.mxu0 %v58
    %127 = vmatpush1.msra.mxu0 %v57
    %128 = vmatprep.subr.mxu0 %v56
    %129 = vmatpush1.msra.mxu0 %v55
    %130 = vmatprep.subr.mxu0 %v54
    %131 = vmatpush1.msra.mxu0 %v53
    %132 = vmatprep.subr.mxu0 %v52
    %133 = vmatpush1.msra.mxu0 %v51
    %134 = vmatprep.subr.mxu0 %v50
    %135 = vmatpush1.msra.mxu0 %v49
    %136 = vmatprep.subr.mxu0 %v48
    %137 = vmatpush1.msra.mxu0 %v47
    %138 = vmatprep.subr.mxu0 %v46
    %139 = vmatpush1.msra.mxu0 %v45
    %140 = vmatprep.subr.mxu0 %v44
    %141 = vmatpush1.msra.mxu0 %v43
    %142 = vmatprep.subr.mxu0 %v42
    %143 = vmatpush1.msra.mxu0 %v41
    %144 = vmatprep.subr.mxu0 %v40
    %145 = vmatpush1.msra.mxu0 %v39
    %146 = vmatprep.subr.mxu0 %v102
    %147 = vmatpush2.msra.mxu0 %v101
    %148 = vmatprep.subr.mxu0 %v100
    %149 = vmatpush2.msra.mxu0 %v99
    %150 = vmatprep.subr.mxu0 %v98
    %151 = vmatpush2.msra.mxu0 %v97
    %152 = vmatprep.subr.mxu0 %v96
    %153 = vmatpush2.msra.mxu0 %v95
    %154 = vmatprep.subr.mxu0 %v94
    %155 = vmatpush2.msra.mxu0 %v93
    %156 = vmatprep.subr.mxu0 %v92
    %157 = vmatpush2.msra.mxu0 %v91
    %158 = vmatprep.subr.mxu0 %v90
    %159 = vmatpush2.msra.mxu0 %v89
    %160 = vmatprep.subr.mxu0 %v88
    %161 = vmatpush2.msra.mxu0 %v87
    %162 = vmatprep.subr.mxu0 %v86
    %163 = vmatpush2.msra.mxu0 %v85
    %164 = vmatprep.subr.mxu0 %v84
    %165 = vmatpush2.msra.mxu0 %v83
    %166 = vmatprep.subr.mxu0 %v82
    %167 = vmatpush2.msra.mxu0 %v81
    %168 = vmatprep.subr.mxu0 %v80
    %169 = vmatpush2.msra.mxu0 %v79
    %170 = vmatprep.subr.mxu0 %v78
    %171 = vmatpush2.msra.mxu0 %v77
    %172 = vmatprep.subr.mxu0 %v76
    %173 = vmatpush2.msra.mxu0 %v75
    %174 = vmatprep.subr.mxu0 %v74
    %175 = vmatpush2.msra.mxu0 %v73
    %176 = vmatprep.subr.mxu0 %v72
    %177 = vmatpush2.msra.mxu0 %v71
    %178 = vmatprep.mubr.f32.mxu0 %v111
    %179 = vmatmul.mubr.f32.gmra.mxu0 %v110
    %v180 = vpop.f32.mrf.mxu0
    %v181 = vadd.f32 0.0, %v180
    %v182 = vpop.f32.mrf.mxu0
    %v183 = vadd.f32 0.0, %v182
    %184 = vdwg.mxu0
    %v187 = vcombine.low %v181, %v183
    %v189 = vunpack.c.l.s4 1983009808
    %v190 = vunpack.c.0.s8 %v189
    %v191 = vlaneseq
    %v192 = vshrl.u32 %v191, 7
    %v193 = vsub.s32 %v190, %v192
    %v194 = vrot.slane %v187, %v193
    %196 = vst [vmem:[#allocation7] sm:$0xf] %v194
    // Predicated region
    $region18: #{tpu_custom_call.1} parent=1 // pred_check
      _
    $region19: #{tpu_custom_call.1} parent=1 // pred_check_branch
      %198 = sbr.rel (0) target = $region21
    $region20: #{tpu_custom_call.1} parent=1 // pred_region
      %s200 = ssub.s32 64, 64
      %201 = vsyncadd [#allocation4], %s200
      %s203 = sshll.u32 [#allocation7], 4
      %s204 = int_to_ptr.vmem [resolvable:$true] %s203
      %206 = dma.vmem_to_hbm [thread:$0]  %s204, 64, %s2, [#allocation4]
    $region21: #{tpu_custom_call.1} parent=1 // pred_fallthru
      _
    // Predicated region
    $region22: #{tpu_custom_call.1} parent=1 // pred_check
      _
    $region23: #{tpu_custom_call.1} parent=1 // pred_check_branch
      %208 = sbr.rel (0) target = $region25
    $region24: #{tpu_custom_call.1} parent=1 // pred_region
      %209 = dma.done [#allocation4], 64
    $region25: #{tpu_custom_call.1} parent=1 // pred_fallthru
      _
    %210 = vsyncpa [#allocation3], 1
    %211 = vsyncpa [#allocation6], 1
    %212 = vsyncpa [#allocation4], 1

</llo_original>
